<compile_context>
chip_gen: v5e
topology: v5e:2x2
jax: 0.10.0
libtpu: 0.0.40
codegen_flags: <defaults>
</compile_context>

<pallas_src>
import functools

import jax
import jax.numpy as jnp
from jax import lax
from jax.experimental import pallas as pl
from jax.experimental.pallas import tpu as pltpu

# ----------------------------- problem sizes --------------------------------
NUM_RAW = 2
NUM_ANGLE = 1
N = NUM_RAW + NUM_ANGLE           # dq dimension
QD = NUM_RAW + 2 * NUM_ANGLE      # q dimension (raw + cos/sin pairs)
N_OFF = N * (N - 1) // 2          # strictly-lower-triangular entries
N_OUT_M = N_OFF + N               # mass-matrix MLP output dimension
HM = 16                           # mass MLP hidden width
HV = 16                           # potential MLP hidden width
EPS = 1e-4                        # PSD regularizer on M
BS = 8                            # batch size
LANE = 128                        # batch tile (lane axis)

NOUT2 = N_OUT_M * (1 + QD) + QD   # fused 2nd-matmul output rows (lvec|Jflat|dV)
NCOL2 = 2 * HM + HV + 1           # fused 2nd-matmul contraction ([hm|tm|tv|1])


def _transform(g, x1, x2):
    """d/d(r, x1, x2) -> d/d(r, theta):  d/dth = -x2*d/dx1 + x1*d/dx2.

    g: (QD, B) -> (N, B)."""
    dr = g[:NUM_RAW]
    g1 = g[NUM_RAW:NUM_RAW + NUM_ANGLE]
    g2 = g[NUM_RAW + NUM_ANGLE:QD]
    return jnp.concatenate([dr, -x2 * g1 + x1 * g2], axis=0)


# ------------------------------- the kernel ---------------------------------
def lnnode_kernel(x_ref, w1_ref, p_ref, o_ref):
    f32 = jnp.float32
    x = x_ref[...]                              # (QD+N, Bt), batch on lanes
    q = x[:QD]                                  # (QD, Bt)
    dq = x[QD:QD + N]                           # (N, Bt)
    x1 = q[NUM_RAW:NUM_RAW + NUM_ANGLE]         # cos(theta)   (1, Bt)
    x2 = q[NUM_RAW + NUM_ANGLE:QD]              # sin(theta)   (1, Bt)
    dq_ang = dq[NUM_RAW:]
    dx1 = -x2 * dq_ang
    dx2 = x1 * dq_ang

    ones = jnp.ones_like(x1)                    # (1, Bt)

    # ---- fused matmul #1: layer-1 of both MLPs (biases via ones row) ----
    q_aug = jnp.concatenate([q, ones], axis=0)  # (QD+1, Bt)
    pre = jnp.dot(w1_ref[...], q_aug, preferred_element_type=f32)  # (HM+HV, Bt)
    h = jnp.tanh(pre)
    hm = h[:HM]                                 # (HM, Bt)
    hv = h[HM:]                                 # (HV, Bt)
    tm = 1.0 - hm * hm                          # tanh'(pre) mass net
    tv = 1.0 - hv * hv                          # tanh'(pre) potential net

    # ---- fused matmul #2: lvec | analytic Jacobian dl/dq | dV/dq ----
    feat = jnp.concatenate([hm, tm, tv, ones], axis=0)              # (NCOL2, Bt)
    out2 = jnp.dot(p_ref[...], feat, preferred_element_type=f32)    # (NOUT2, Bt)

    lvec = out2[:N_OUT_M]                                           # (N_OUT_M, Bt)
    jflat = out2[N_OUT_M:N_OUT_M + N_OUT_M * QD]                    # (N_OUT_M*QD, Bt)
    dV = out2[N_OUT_M + N_OUT_M * QD:]                              # (QD, Bt)
    Jl = [jflat[o * QD:(o + 1) * QD] for o in range(N_OUT_M)]       # each (QD, Bt)

    # ---- assemble lower-triangular Cholesky-factor L(q) and dL/dq ----
    pairs = [(i, j) for i in range(N) for j in range(i)]
    Lm = [[None] * N for _ in range(N)]
    dLm = [[None] * N for _ in range(N)]
    for idx, (i, j) in enumerate(pairs):
        Lm[i][j] = lvec[idx:idx + 1]                                 # (1, Bt)
        dLm[i][j] = Jl[idx]                                          # (QD, Bt)
    for i in range(N):
        ld = lvec[N_OFF + i:N_OFF + i + 1]
        # stable softplus + sigmoid sharing a single exp
        e = jnp.exp(-jnp.abs(ld))
        log1pe = jnp.log1p(e)
        sp = jnp.maximum(ld, 0.0) + log1pe                           # softplus(ld)
        inv = 1.0 / (1.0 + e)
        sg = jnp.where(ld >= 0.0, inv, e * inv)                      # sigmoid(ld)
        Lm[i][i] = sp
        dLm[i][i] = sg * Jl[N_OFF + i]

    # ---- M = L L^T + eps*I  and  dM/dq ----
    M = [[None] * N for _ in range(N)]
    dM = [[None] * N for _ in range(N)]
    for i in range(N):
        for k in range(i, N):
            m_val = Lm[i][0] * Lm[k][0]
            d_val = dLm[i][0] * Lm[k][0] + Lm[i][0] * dLm[k][0]
            for j in range(1, i + 1):
                m_val = m_val + Lm[i][j] * Lm[k][j]
                d_val = d_val + dLm[i][j] * Lm[k][j] + Lm[i][j] * dLm[k][j]
            if i == k:
                m_val = m_val + EPS
            M[i][k] = m_val
            M[k][i] = m_val
            dM[i][k] = d_val
            dM[k][i] = d_val

    dqc = [dq[t:t + 1] for t in range(N)]                            # (1, Bt) each

    # ---- rows of dqMdq (transformed to (r, theta)) and (dqMdq @ dq) ----
    term = []
    for i in range(N):
        Gi = dM[i][0] * dqc[0]                  # d(M dq)_i / dq : (QD, Bt)
        for k in range(1, N):
            Gi = Gi + dM[i][k] * dqc[k]
        Gi_t = _transform(Gi, x1, x2)           # (N, Bt)
        ti = Gi_t[0:1] * dqc[0]
        for k in range(1, N):
            ti = ti + Gi_t[k:k + 1] * dqc[k]
        term.append(ti)                         # (1, Bt)

    # ---- gradient of Lagrangian  L = 0.5 dq^T M(q) dq - V(q)  wrt q ----
    kin = None
    for i in range(N):
        for k in range(N):
            c = 0.5 * dqc[i] * dqc[k]
            kin = c * dM[i][k] if kin is None else kin + c * dM[i][k]
    gradL_q = kin - dV                          # (QD, Bt)
    dLdq = _transform(gradL_q, x1, x2)          # (N, Bt)

    # ---- Mddq = dLdq - dqMdq @ dq ----
    b = [dLdq[i:i + 1] - term[i] for i in range(N)]

    # ---- Cholesky + cholesky_solve (unrolled; divides -> rsqrt multiplies) ----
    C = [[None] * N for _ in range(N)]
    rinv = [None] * N
    for i in range(N):
        for j in range(i + 1):
            s = M[i][j]
            for t in range(j):
                s = s - C[i][t] * C[j][t]
            if i == j:
                ri = lax.rsqrt(s)
                rinv[i] = ri
                C[i][i] = s * ri                # = sqrt(s)
            else:
                C[i][j] = s * rinv[j]
    y = [None] * N
    for i in range(N):
        s = b[i]
        for t in range(i):
            s = s - C[i][t] * y[t]
        y[i] = s * rinv[i]
    z = [None] * N
    for i in reversed(range(N)):
        s = y[i]
        for t in range(i + 1, N):
            s = s - C[t][i] * z[t]
        z[i] = s * rinv[i]

    # ---- lane-dense output, direct row-slice stores ----
    dt = o_ref.dtype
    o_ref[0:NUM_RAW, :] = dq[:NUM_RAW].astype(dt)
    o_ref[NUM_RAW:NUM_RAW + NUM_ANGLE, :] = dx1.astype(dt)
    o_ref[NUM_RAW + NUM_ANGLE:QD, :] = dx2.astype(dt)
    for i in range(N):
        o_ref[QD + i:QD + i + 1, :] = z[i].astype(dt)


# --------------------------- host-side weight packing ------------------------
def _pack_weights(params, dtype):
    W1m, b1m = params['W1m'], params['b1m']
    W2m, b2m = params['W2m'], params['b2m']
    W1v, b1v = params['W1v'], params['b1v']
    W2v = params['W2v']

    # layer-1 of both MLPs with bias column (applied to [q; 1])
    W1aug = jnp.concatenate(
        [jnp.concatenate([W1m, b1m[:, None]], axis=1),
         jnp.concatenate([W1v, b1v[:, None]], axis=1)], axis=0).astype(dtype)

    # block RHS applied to [hm | tm | tv | 1]:
    #   rows 0..N_OUT_M-1                : lvec  = W2m @ hm + b2m
    #   rows N_OUT_M..N_OUT_M(1+QD)-1    : Jflat[o*QD+qi] = sum_h W2m[o,h]W1m[h,qi] tm[h]
    #   last QD rows                     : dV[qi] = sum_h W2v[0,h]W1v[h,qi] tv[h]
    P = jnp.zeros((NOUT2, NCOL2), dtype)
    P = P.at[:N_OUT_M, 0:HM].set(W2m)
    P = P.at[:N_OUT_M, NCOL2 - 1].set(b2m)
    A = W2m[:, :, None] * W1m[None, :, :]                    # (N_OUT_M, HM, QD)
    Jblk = jnp.transpose(A, (0, 2, 1)).reshape(N_OUT_M * QD, HM)
    P = P.at[N_OUT_M:N_OUT_M + N_OUT_M * QD, HM:2 * HM].set(Jblk)
    Bblk = W2v[0][:, None] * W1v                              # (HV, QD)
    P = P.at[N_OUT_M + N_OUT_M * QD:, 2 * HM:2 * HM + HV].set(Bblk.T)
    return W1aug, P


# ------------------------------- wrapper -------------------------------------
@functools.partial(jax.jit, static_argnames=("b_tile",))
def lnnode_forward(x, params, b_tile=LANE):
    bs = x.shape[0]
    out_dim = QD + N
    bp = ((bs + b_tile - 1) // b_tile) * b_tile

    # batch-in-lanes layout: (features, batch), batch padded to the tile size
    xt = jnp.zeros((out_dim, bp), x.dtype).at[:, :bs].set(x.T)
    W1aug, P = _pack_weights(params, x.dtype)

    out_t = pl.pallas_call(
        lnnode_kernel,
        out_shape=jax.ShapeDtypeStruct((out_dim, bp), x.dtype),
        grid_spec=pltpu.PrefetchScalarGridSpec(
            num_scalar_prefetch=0,
            grid=(bp // b_tile,),
            in_specs=[
                pl.BlockSpec((out_dim, b_tile), lambda i: (0, i)),
                pl.BlockSpec(W1aug.shape, lambda i: (0, 0)),
                pl.BlockSpec(P.shape, lambda i: (0, 0)),
            ],
            out_specs=pl.BlockSpec((out_dim, b_tile), lambda i: (0, i)),
        ),
        compiler_params=pltpu.CompilerParams(
            dimension_semantics=("parallel",)),
    )(xt, W1aug, P)

    return out_t[:, :bs].T


# ------------------------- pure-JAX autodiff reference -----------------------
def lnnode_reference(x, params):
    W1m, b1m, W2m, b2m = params['W1m'], params['b1m'], params['W2m'], params['b2m']
    W1v, b1v, W2v, b2v = params['W1v'], params['b1v'], params['W2v'], params['b2v']

    def mass_M(q):
        h = jnp.tanh(W1m @ q + b1m)
        l = W2m @ h + b2m
        L = jnp.zeros((N, N), x.dtype)
        idx = 0
        for i in range(N):
            for j in range(i):
                L = L.at[i, j].set(l[idx])
                idx += 1
        for i in range(N):
            L = L.at[i, i].set(jax.nn.softplus(l[N_OFF + i]))
        return L @ L.T + EPS * jnp.eye(N, dtype=x.dtype)

    def potential(q):
        h = jnp.tanh(W1v @ q + b1v)
        return (W2v @ h + b2v)[0]

    def single(xv):
        q = xv[:QD]
        dq = xv[QD:QD + N]
        x1 = q[NUM_RAW:NUM_RAW + NUM_ANGLE]
        x2 = q[NUM_RAW + NUM_ANGLE:QD]
        dq_ang = dq[NUM_RAW:]
        dx1 = -x2 * dq_ang
        dx2 = x1 * dq_ang

        J = jax.jacrev(lambda qq: mass_M(qq) @ dq)(q)       # (N, QD)
        dr_t = J[:, :NUM_RAW]
        d1_t = J[:, NUM_RAW:NUM_RAW + NUM_ANGLE]
        d2_t = J[:, NUM_RAW + NUM_ANGLE:QD]
        dqMdq = jnp.concatenate(
            [dr_t, -x2[None, :] * d1_t + x1[None, :] * d2_t], axis=1)

        gL = jax.grad(lambda qq: 0.5 * dq @ (mass_M(qq) @ dq) - potential(qq))(q)
        dLdq = jnp.concatenate(
            [gL[:NUM_RAW],
             -x2 * gL[NUM_RAW:NUM_RAW + NUM_ANGLE] + x1 * gL[NUM_RAW + NUM_ANGLE:QD]])
        Mddq = dLdq - dqMdq @ dq
        ddq = jnp.linalg.solve(mass_M(q), Mddq)
        return jnp.concatenate([dq[:NUM_RAW], dx1, dx2, ddq])

    with jax.default_matmul_precision('highest'):
        return jax.vmap(single)(x)


# --------------------------------- main ---------------------------------------
if __name__ == "__main__":
    key = jax.random.PRNGKey(0)
    ks = jax.random.split(key, 9)
    params = {
        'W1m': jax.random.normal(ks[0], (HM, QD), jnp.float32) / jnp.sqrt(QD),
        'b1m': 0.1 * jax.random.normal(ks[1], (HM,), jnp.float32),
        'W2m': jax.random.normal(ks[2], (N_OUT_M, HM), jnp.float32) / jnp.sqrt(HM),
        'b2m': 0.1 * jax.random.normal(ks[3], (N_OUT_M,), jnp.float32),
        'W1v': jax.random.normal(ks[4], (HV, QD), jnp.float32) / jnp.sqrt(QD),
        'b1v': 0.1 * jax.random.normal(ks[5], (HV,), jnp.float32),
        'W2v': jax.random.normal(ks[6], (1, HV), jnp.float32) / jnp.sqrt(HV),
        'b2v': 0.1 * jax.random.normal(ks[7], (1,), jnp.float32),
    }
    x = 0.8 * jax.random.normal(ks[8], (BS, QD + N), jnp.float32)

    out = jax.block_until_ready(lnnode_forward(x, params))
    ref = jax.block_until_ready(lnnode_reference(x, params))

    assert out.shape == (BS, QD + N)
    assert bool(jnp.all(jnp.isfinite(out)))
    err = float(jnp.max(jnp.abs(out - ref)))
    scale = float(jnp.max(jnp.abs(ref))) + 1e-6
    assert err <= 5e-3 * scale + 5e-4, f"mismatch: max abs err {err} (scale {scale})"
    print("KERNEL_OK")
</pallas_src>

<mosaic_0001>
module attributes {stable_mosaic.version = 11 : i64} {
  func.func @lnnode_kernel(%arg0: i32, %arg1: memref<7x128xf32, #tpu.memory_space<vmem>>, %arg2: memref<32x5xf32, #tpu.memory_space<vmem>>, %arg3: memref<34x49xf32, #tpu.memory_space<vmem>>, %arg4: memref<7x128xf32, #tpu.memory_space<vmem>>) attributes {dimension_semantics = [#tpu.dimension_semantics<parallel>], iteration_bounds = array<i64: 1>, scalar_prefetch = 0 : i64, scratch_operands = 0 : i64, tpu.core_type = #tpu.core_type<tc>, window_params = [{transform_indices = @transform_0, window_bounds = array<i64: 7, 128>}, {pipeline_mode = #tpu.pipeline_mode<synchronous>, transform_indices = @transform_1, window_bounds = array<i64: 32, 5>}, {pipeline_mode = #tpu.pipeline_mode<synchronous>, transform_indices = @transform_2, window_bounds = array<i64: 34, 49>}, {transform_indices = @transform_3, window_bounds = array<i64: 7, 128>}]} {
    %c0 = arith.constant 0 : index
    %c0_0 = arith.constant 0 : index
    %0 = vector.load %arg1[%c0, %c0_0] : memref<7x128xf32, #tpu.memory_space<vmem>>, vector<7x128xf32>
    %1 = vector.extract_strided_slice %0 {offsets = [0, 0], sizes = [4, 128], strides = [1, 1]} : vector<7x128xf32> to vector<4x128xf32>
    %2 = vector.extract_strided_slice %0 {offsets = [4, 0], sizes = [3, 128], strides = [1, 1]} : vector<7x128xf32> to vector<3x128xf32>
    %3 = vector.extract_strided_slice %1 {offsets = [2, 0], sizes = [1, 128], strides = [1, 1]} : vector<4x128xf32> to vector<1x128xf32>
    %4 = vector.extract_strided_slice %1 {offsets = [3, 0], sizes = [1, 128], strides = [1, 1]} : vector<4x128xf32> to vector<1x128xf32>
    %5 = vector.extract_strided_slice %2 {offsets = [2, 0], sizes = [1, 128], strides = [1, 1]} : vector<3x128xf32> to vector<1x128xf32>
    %cst = arith.constant 0.000000e+00 : f32
    %6 = vector.broadcast %cst : f32 to vector<1x128xf32>
    %7 = arith.subf %6, %4 : vector<1x128xf32>
    %8 = arith.mulf %7, %5 : vector<1x128xf32>
    %9 = arith.mulf %3, %5 : vector<1x128xf32>
    %cst_1 = arith.constant 1.000000e+00 : f32
    %10 = vector.broadcast %cst_1 : f32 to vector<1x128xf32>
    %11 = tpu.concatenate %1, %10 in 0 : vector<4x128xf32>, vector<1x128xf32> -> vector<5x128xf32>
    %c0_2 = arith.constant 0 : index
    %c0_3 = arith.constant 0 : index
    %12 = vector.load %arg2[%c0_2, %c0_3] : memref<32x5xf32, #tpu.memory_space<vmem>>, vector<32x5xf32>
    %cst_4 = arith.constant dense<0.000000e+00> : vector<32x128xf32>
    %13 = tpu.matmul %12, %11, %cst_4 {dimension_numbers = #tpu.dot_dimension_numbers<[1], [0], [0], [1], [0, 0, 1, 1], [], []>} : vector<32x5xf32>, vector<5x128xf32>, vector<32x128xf32> -> vector<32x128xf32>
    %14 = math.tanh %13 : vector<32x128xf32>
    %15 = vector.extract_strided_slice %14 {offsets = [0, 0], sizes = [16, 128], strides = [1, 1]} : vector<32x128xf32> to vector<16x128xf32>
    %16 = vector.extract_strided_slice %14 {offsets = [16, 0], sizes = [16, 128], strides = [1, 1]} : vector<32x128xf32> to vector<16x128xf32>
    %17 = arith.mulf %15, %15 : vector<16x128xf32>
    %cst_5 = arith.constant 1.000000e+00 : f32
    %18 = vector.broadcast %cst_5 : f32 to vector<16x128xf32>
    %19 = arith.subf %18, %17 : vector<16x128xf32>
    %20 = arith.mulf %16, %16 : vector<16x128xf32>
    %cst_6 = arith.constant 1.000000e+00 : f32
    %21 = vector.broadcast %cst_6 : f32 to vector<16x128xf32>
    %22 = arith.subf %21, %20 : vector<16x128xf32>
    %23 = tpu.concatenate %15, %19, %22, %10 in 0 : vector<16x128xf32>, vector<16x128xf32>, vector<16x128xf32>, vector<1x128xf32> -> vector<49x128xf32>
    %c0_7 = arith.constant 0 : index
    %c0_8 = arith.constant 0 : index
    %24 = vector.load %arg3[%c0_7, %c0_8] : memref<34x49xf32, #tpu.memory_space<vmem>>, vector<34x49xf32>
    %cst_9 = arith.constant dense<0.000000e+00> : vector<34x128xf32>
    %25 = tpu.matmul %24, %23, %cst_9 {dimension_numbers = #tpu.dot_dimension_numbers<[1], [0], [0], [1], [0, 0, 1, 1], [], []>} : vector<34x49xf32>, vector<49x128xf32>, vector<34x128xf32> -> vector<34x128xf32>
    %26 = vector.extract_strided_slice %25 {offsets = [0, 0], sizes = [6, 128], strides = [1, 1]} : vector<34x128xf32> to vector<6x128xf32>
    %27 = vector.extract_strided_slice %25 {offsets = [6, 0], sizes = [24, 128], strides = [1, 1]} : vector<34x128xf32> to vector<24x128xf32>
    %28 = vector.extract_strided_slice %25 {offsets = [30, 0], sizes = [4, 128], strides = [1, 1]} : vector<34x128xf32> to vector<4x128xf32>
    %29 = vector.extract_strided_slice %27 {offsets = [0, 0], sizes = [4, 128], strides = [1, 1]} : vector<24x128xf32> to vector<4x128xf32>
    %30 = vector.extract_strided_slice %27 {offsets = [4, 0], sizes = [4, 128], strides = [1, 1]} : vector<24x128xf32> to vector<4x128xf32>
    %31 = vector.extract_strided_slice %27 {offsets = [8, 0], sizes = [4, 128], strides = [1, 1]} : vector<24x128xf32> to vector<4x128xf32>
    %32 = vector.extract_strided_slice %27 {offsets = [12, 0], sizes = [4, 128], strides = [1, 1]} : vector<24x128xf32> to vector<4x128xf32>
    %33 = vector.extract_strided_slice %27 {offsets = [16, 0], sizes = [4, 128], strides = [1, 1]} : vector<24x128xf32> to vector<4x128xf32>
    %34 = vector.extract_strided_slice %27 {offsets = [20, 0], sizes = [4, 128], strides = [1, 1]} : vector<24x128xf32> to vector<4x128xf32>
    %35 = vector.extract_strided_slice %26 {offsets = [0, 0], sizes = [1, 128], strides = [1, 1]} : vector<6x128xf32> to vector<1x128xf32>
    %36 = vector.extract_strided_slice %26 {offsets = [1, 0], sizes = [1, 128], strides = [1, 1]} : vector<6x128xf32> to vector<1x128xf32>
    %37 = vector.extract_strided_slice %26 {offsets = [2, 0], sizes = [1, 128], strides = [1, 1]} : vector<6x128xf32> to vector<1x128xf32>
    %38 = vector.extract_strided_slice %26 {offsets = [3, 0], sizes = [1, 128], strides = [1, 1]} : vector<6x128xf32> to vector<1x128xf32>
    %39 = math.absf %38 : vector<1x128xf32>
    %cst_10 = arith.constant 0.000000e+00 : f32
    %40 = vector.broadcast %cst_10 : f32 to vector<1x128xf32>
    %41 = arith.subf %40, %39 : vector<1x128xf32>
    %42 = math.exp %41 : vector<1x128xf32>
    %43 = math.log1p %42 : vector<1x128xf32>
    %cst_11 = arith.constant 0.000000e+00 : f32
    %44 = vector.broadcast %cst_11 : f32 to vector<1x128xf32>
    %45 = arith.maximumf %38, %44 : vector<1x128xf32>
    %46 = arith.addf %45, %43 : vector<1x128xf32>
    %cst_12 = arith.constant 1.000000e+00 : f32
    %47 = vector.broadcast %cst_12 : f32 to vector<1x128xf32>
    %48 = arith.addf %47, %42 : vector<1x128xf32>
    %cst_13 = arith.constant 1.000000e+00 : f32
    %49 = vector.broadcast %cst_13 : f32 to vector<1x128xf32>
    %50 = arith.divf %49, %48 : vector<1x128xf32>
    %cst_14 = arith.constant 0.000000e+00 : f32
    %51 = vector.broadcast %cst_14 : f32 to vector<1x128xf32>
    %52 = arith.cmpf oge, %38, %51 : vector<1x128xf32>
    %53 = arith.mulf %42, %50 : vector<1x128xf32>
    %54 = arith.select %52, %50, %53 : vector<1x128xi1>, vector<1x128xf32>
    %55 = vector.broadcast %54 : vector<1x128xf32> to vector<4x128xf32>
    %56 = arith.mulf %55, %32 : vector<4x128xf32>
    %57 = vector.extract_strided_slice %26 {offsets = [4, 0], sizes = [1, 128], strides = [1, 1]} : vector<6x128xf32> to vector<1x128xf32>
    %58 = math.absf %57 : vector<1x128xf32>
    %cst_15 = arith.constant 0.000000e+00 : f32
    %59 = vector.broadcast %cst_15 : f32 to vector<1x128xf32>
    %60 = arith.subf %59, %58 : vector<1x128xf32>
    %61 = math.exp %60 : vector<1x128xf32>
    %62 = math.log1p %61 : vector<1x128xf32>
    %cst_16 = arith.constant 0.000000e+00 : f32
    %63 = vector.broadcast %cst_16 : f32 to vector<1x128xf32>
    %64 = arith.maximumf %57, %63 : vector<1x128xf32>
    %65 = arith.addf %64, %62 : vector<1x128xf32>
    %cst_17 = arith.constant 1.000000e+00 : f32
    %66 = vector.broadcast %cst_17 : f32 to vector<1x128xf32>
    %67 = arith.addf %66, %61 : vector<1x128xf32>
    %cst_18 = arith.constant 1.000000e+00 : f32
    %68 = vector.broadcast %cst_18 : f32 to vector<1x128xf32>
    %69 = arith.divf %68, %67 : vector<1x128xf32>
    %cst_19 = arith.constant 0.000000e+00 : f32
    %70 = vector.broadcast %cst_19 : f32 to vector<1x128xf32>
    %71 = arith.cmpf oge, %57, %70 : vector<1x128xf32>
    %72 = arith.mulf %61, %69 : vector<1x128xf32>
    %73 = arith.select %71, %69, %72 : vector<1x128xi1>, vector<1x128xf32>
    %74 = vector.broadcast %73 : vector<1x128xf32> to vector<4x128xf32>
    %75 = arith.mulf %74, %33 : vector<4x128xf32>
    %76 = vector.extract_strided_slice %26 {offsets = [5, 0], sizes = [1, 128], strides = [1, 1]} : vector<6x128xf32> to vector<1x128xf32>
    %77 = math.absf %76 : vector<1x128xf32>
    %cst_20 = arith.constant 0.000000e+00 : f32
    %78 = vector.broadcast %cst_20 : f32 to vector<1x128xf32>
    %79 = arith.subf %78, %77 : vector<1x128xf32>
    %80 = math.exp %79 : vector<1x128xf32>
    %81 = math.log1p %80 : vector<1x128xf32>
    %cst_21 = arith.constant 0.000000e+00 : f32
    %82 = vector.broadcast %cst_21 : f32 to vector<1x128xf32>
    %83 = arith.maximumf %76, %82 : vector<1x128xf32>
    %84 = arith.addf %83, %81 : vector<1x128xf32>
    %cst_22 = arith.constant 1.000000e+00 : f32
    %85 = vector.broadcast %cst_22 : f32 to vector<1x128xf32>
    %86 = arith.addf %85, %80 : vector<1x128xf32>
    %cst_23 = arith.constant 1.000000e+00 : f32
    %87 = vector.broadcast %cst_23 : f32 to vector<1x128xf32>
    %88 = arith.divf %87, %86 : vector<1x128xf32>
    %cst_24 = arith.constant 0.000000e+00 : f32
    %89 = vector.broadcast %cst_24 : f32 to vector<1x128xf32>
    %90 = arith.cmpf oge, %76, %89 : vector<1x128xf32>
    %91 = arith.mulf %80, %88 : vector<1x128xf32>
    %92 = arith.select %90, %88, %91 : vector<1x128xi1>, vector<1x128xf32>
    %93 = vector.broadcast %92 : vector<1x128xf32> to vector<4x128xf32>
    %94 = arith.mulf %93, %34 : vector<4x128xf32>
    %95 = arith.mulf %46, %46 : vector<1x128xf32>
    %96 = vector.broadcast %46 : vector<1x128xf32> to vector<4x128xf32>
    %97 = arith.mulf %56, %96 : vector<4x128xf32>
    %98 = vector.broadcast %46 : vector<1x128xf32> to vector<4x128xf32>
    %99 = arith.mulf %98, %56 : vector<4x128xf32>
    %100 = arith.addf %97, %99 : vector<4x128xf32>
    %cst_25 = arith.constant 9.99999974E-5 : f32
    %101 = vector.broadcast %cst_25 : f32 to vector<1x128xf32>
    %102 = arith.addf %95, %101 : vector<1x128xf32>
    %103 = arith.mulf %46, %35 : vector<1x128xf32>
    %104 = vector.broadcast %35 : vector<1x128xf32> to vector<4x128xf32>
    %105 = arith.mulf %56, %104 : vector<4x128xf32>
    %106 = vector.broadcast %46 : vector<1x128xf32> to vector<4x128xf32>
    %107 = arith.mulf %106, %29 : vector<4x128xf32>
    %108 = arith.addf %105, %107 : vector<4x128xf32>
    %109 = arith.mulf %46, %36 : vector<1x128xf32>
    %110 = vector.broadcast %36 : vector<1x128xf32> to vector<4x128xf32>
    %111 = arith.mulf %56, %110 : vector<4x128xf32>
    %112 = vector.broadcast %46 : vector<1x128xf32> to vector<4x128xf32>
    %113 = arith.mulf %112, %30 : vector<4x128xf32>
    %114 = arith.addf %111, %113 : vector<4x128xf32>
    %115 = arith.mulf %35, %35 : vector<1x128xf32>
    %116 = vector.broadcast %35 : vector<1x128xf32> to vector<4x128xf32>
    %117 = arith.mulf %29, %116 : vector<4x128xf32>
    %118 = vector.broadcast %35 : vector<1x128xf32> to vector<4x128xf32>
    %119 = arith.mulf %118, %29 : vector<4x128xf32>
    %120 = arith.addf %117, %119 : vector<4x128xf32>
    %121 = arith.mulf %65, %65 : vector<1x128xf32>
    %122 = arith.addf %115, %121 : vector<1x128xf32>
    %123 = vector.broadcast %65 : vector<1x128xf32> to vector<4x128xf32>
    %124 = arith.mulf %75, %123 : vector<4x128xf32>
    %125 = arith.addf %120, %124 : vector<4x128xf32>
    %126 = vector.broadcast %65 : vector<1x128xf32> to vector<4x128xf32>
    %127 = arith.mulf %126, %75 : vector<4x128xf32>
    %128 = arith.addf %125, %127 : vector<4x128xf32>
    %cst_26 = arith.constant 9.99999974E-5 : f32
    %129 = vector.broadcast %cst_26 : f32 to vector<1x128xf32>
    %130 = arith.addf %122, %129 : vector<1x128xf32>
    %131 = arith.mulf %35, %36 : vector<1x128xf32>
    %132 = vector.broadcast %36 : vector<1x128xf32> to vector<4x128xf32>
    %133 = arith.mulf %29, %132 : vector<4x128xf32>
    %134 = vector.broadcast %35 : vector<1x128xf32> to vector<4x128xf32>
    %135 = arith.mulf %134, %30 : vector<4x128xf32>
    %136 = arith.addf %133, %135 : vector<4x128xf32>
    %137 = arith.mulf %65, %37 : vector<1x128xf32>
    %138 = arith.addf %131, %137 : vector<1x128xf32>
    %139 = vector.broadcast %37 : vector<1x128xf32> to vector<4x128xf32>
    %140 = arith.mulf %75, %139 : vector<4x128xf32>
    %141 = arith.addf %136, %140 : vector<4x128xf32>
    %142 = vector.broadcast %65 : vector<1x128xf32> to vector<4x128xf32>
    %143 = arith.mulf %142, %31 : vector<4x128xf32>
    %144 = arith.addf %141, %143 : vector<4x128xf32>
    %145 = arith.mulf %36, %36 : vector<1x128xf32>
    %146 = vector.broadcast %36 : vector<1x128xf32> to vector<4x128xf32>
    %147 = arith.mulf %30, %146 : vector<4x128xf32>
    %148 = vector.broadcast %36 : vector<1x128xf32> to vector<4x128xf32>
    %149 = arith.mulf %148, %30 : vector<4x128xf32>
    %150 = arith.addf %147, %149 : vector<4x128xf32>
    %151 = arith.mulf %37, %37 : vector<1x128xf32>
    %152 = arith.addf %145, %151 : vector<1x128xf32>
    %153 = vector.broadcast %37 : vector<1x128xf32> to vector<4x128xf32>
    %154 = arith.mulf %31, %153 : vector<4x128xf32>
    %155 = arith.addf %150, %154 : vector<4x128xf32>
    %156 = vector.broadcast %37 : vector<1x128xf32> to vector<4x128xf32>
    %157 = arith.mulf %156, %31 : vector<4x128xf32>
    %158 = arith.addf %155, %157 : vector<4x128xf32>
    %159 = arith.mulf %84, %84 : vector<1x128xf32>
    %160 = arith.addf %152, %159 : vector<1x128xf32>
    %161 = vector.broadcast %84 : vector<1x128xf32> to vector<4x128xf32>
    %162 = arith.mulf %94, %161 : vector<4x128xf32>
    %163 = arith.addf %158, %162 : vector<4x128xf32>
    %164 = vector.broadcast %84 : vector<1x128xf32> to vector<4x128xf32>
    %165 = arith.mulf %164, %94 : vector<4x128xf32>
    %166 = arith.addf %163, %165 : vector<4x128xf32>
    %cst_27 = arith.constant 9.99999974E-5 : f32
    %167 = vector.broadcast %cst_27 : f32 to vector<1x128xf32>
    %168 = arith.addf %160, %167 : vector<1x128xf32>
    %169 = vector.extract_strided_slice %2 {offsets = [0, 0], sizes = [1, 128], strides = [1, 1]} : vector<3x128xf32> to vector<1x128xf32>
    %170 = vector.extract_strided_slice %2 {offsets = [1, 0], sizes = [1, 128], strides = [1, 1]} : vector<3x128xf32> to vector<1x128xf32>
    %171 = vector.extract_strided_slice %2 {offsets = [2, 0], sizes = [1, 128], strides = [1, 1]} : vector<3x128xf32> to vector<1x128xf32>
    %172 = vector.broadcast %169 : vector<1x128xf32> to vector<4x128xf32>
    %173 = arith.mulf %100, %172 : vector<4x128xf32>
    %174 = vector.broadcast %170 : vector<1x128xf32> to vector<4x128xf32>
    %175 = arith.mulf %108, %174 : vector<4x128xf32>
    %176 = arith.addf %173, %175 : vector<4x128xf32>
    %177 = vector.broadcast %171 : vector<1x128xf32> to vector<4x128xf32>
    %178 = arith.mulf %114, %177 : vector<4x128xf32>
    %179 = arith.addf %176, %178 : vector<4x128xf32>
    %180 = vector.extract_strided_slice %179 {offsets = [0, 0], sizes = [2, 128], strides = [1, 1]} : vector<4x128xf32> to vector<2x128xf32>
    %181 = vector.extract_strided_slice %179 {offsets = [2, 0], sizes = [1, 128], strides = [1, 1]} : vector<4x128xf32> to vector<1x128xf32>
    %182 = vector.extract_strided_slice %179 {offsets = [3, 0], sizes = [1, 128], strides = [1, 1]} : vector<4x128xf32> to vector<1x128xf32>
    %cst_28 = arith.constant 0.000000e+00 : f32
    %183 = vector.broadcast %cst_28 : f32 to vector<1x128xf32>
    %184 = arith.subf %183, %4 : vector<1x128xf32>
    %185 = arith.mulf %184, %181 : vector<1x128xf32>
    %186 = arith.mulf %3, %182 : vector<1x128xf32>
    %187 = arith.addf %185, %186 : vector<1x128xf32>
    %188 = tpu.concatenate %180, %187 in 0 : vector<2x128xf32>, vector<1x128xf32> -> vector<3x128xf32>
    %189 = vector.extract_strided_slice %188 {offsets = [0, 0], sizes = [1, 128], strides = [1, 1]} : vector<3x128xf32> to vector<1x128xf32>
    %190 = arith.mulf %189, %169 : vector<1x128xf32>
    %191 = vector.extract_strided_slice %188 {offsets = [1, 0], sizes = [1, 128], strides = [1, 1]} : vector<3x128xf32> to vector<1x128xf32>
    %192 = arith.mulf %191, %170 : vector<1x128xf32>
    %193 = arith.addf %190, %192 : vector<1x128xf32>
    %194 = vector.extract_strided_slice %188 {offsets = [2, 0], sizes = [1, 128], strides = [1, 1]} : vector<3x128xf32> to vector<1x128xf32>
    %195 = arith.mulf %194, %171 : vector<1x128xf32>
    %196 = arith.addf %193, %195 : vector<1x128xf32>
    %197 = vector.broadcast %169 : vector<1x128xf32> to vector<4x128xf32>
    %198 = arith.mulf %108, %197 : vector<4x128xf32>
    %199 = vector.broadcast %170 : vector<1x128xf32> to vector<4x128xf32>
    %200 = arith.mulf %128, %199 : vector<4x128xf32>
    %201 = arith.addf %198, %200 : vector<4x128xf32>
    %202 = vector.broadcast %171 : vector<1x128xf32> to vector<4x128xf32>
    %203 = arith.mulf %144, %202 : vector<4x128xf32>
    %204 = arith.addf %201, %203 : vector<4x128xf32>
    %205 = vector.extract_strided_slice %204 {offsets = [0, 0], sizes = [2, 128], strides = [1, 1]} : vector<4x128xf32> to vector<2x128xf32>
    %206 = vector.extract_strided_slice %204 {offsets = [2, 0], sizes = [1, 128], strides = [1, 1]} : vector<4x128xf32> to vector<1x128xf32>
    %207 = vector.extract_strided_slice %204 {offsets = [3, 0], sizes = [1, 128], strides = [1, 1]} : vector<4x128xf32> to vector<1x128xf32>
    %cst_29 = arith.constant 0.000000e+00 : f32
    %208 = vector.broadcast %cst_29 : f32 to vector<1x128xf32>
    %209 = arith.subf %208, %4 : vector<1x128xf32>
    %210 = arith.mulf %209, %206 : vector<1x128xf32>
    %211 = arith.mulf %3, %207 : vector<1x128xf32>
    %212 = arith.addf %210, %211 : vector<1x128xf32>
    %213 = tpu.concatenate %205, %212 in 0 : vector<2x128xf32>, vector<1x128xf32> -> vector<3x128xf32>
    %214 = vector.extract_strided_slice %213 {offsets = [0, 0], sizes = [1, 128], strides = [1, 1]} : vector<3x128xf32> to vector<1x128xf32>
    %215 = arith.mulf %214, %169 : vector<1x128xf32>
    %216 = vector.extract_strided_slice %213 {offsets = [1, 0], sizes = [1, 128], strides = [1, 1]} : vector<3x128xf32> to vector<1x128xf32>
    %217 = arith.mulf %216, %170 : vector<1x128xf32>
    %218 = arith.addf %215, %217 : vector<1x128xf32>
    %219 = vector.extract_strided_slice %213 {offsets = [2, 0], sizes = [1, 128], strides = [1, 1]} : vector<3x128xf32> to vector<1x128xf32>
    %220 = arith.mulf %219, %171 : vector<1x128xf32>
    %221 = arith.addf %218, %220 : vector<1x128xf32>
    %222 = vector.broadcast %169 : vector<1x128xf32> to vector<4x128xf32>
    %223 = arith.mulf %114, %222 : vector<4x128xf32>
    %224 = vector.broadcast %170 : vector<1x128xf32> to vector<4x128xf32>
    %225 = arith.mulf %144, %224 : vector<4x128xf32>
    %226 = arith.addf %223, %225 : vector<4x128xf32>
    %227 = vector.broadcast %171 : vector<1x128xf32> to vector<4x128xf32>
    %228 = arith.mulf %166, %227 : vector<4x128xf32>
    %229 = arith.addf %226, %228 : vector<4x128xf32>
    %230 = vector.extract_strided_slice %229 {offsets = [0, 0], sizes = [2, 128], strides = [1, 1]} : vector<4x128xf32> to vector<2x128xf32>
    %231 = vector.extract_strided_slice %229 {offsets = [2, 0], sizes = [1, 128], strides = [1, 1]} : vector<4x128xf32> to vector<1x128xf32>
    %232 = vector.extract_strided_slice %229 {offsets = [3, 0], sizes = [1, 128], strides = [1, 1]} : vector<4x128xf32> to vector<1x128xf32>
    %cst_30 = arith.constant 0.000000e+00 : f32
    %233 = vector.broadcast %cst_30 : f32 to vector<1x128xf32>
    %234 = arith.subf %233, %4 : vector<1x128xf32>
    %235 = arith.mulf %234, %231 : vector<1x128xf32>
    %236 = arith.mulf %3, %232 : vector<1x128xf32>
    %237 = arith.addf %235, %236 : vector<1x128xf32>
    %238 = tpu.concatenate %230, %237 in 0 : vector<2x128xf32>, vector<1x128xf32> -> vector<3x128xf32>
    %239 = vector.extract_strided_slice %238 {offsets = [0, 0], sizes = [1, 128], strides = [1, 1]} : vector<3x128xf32> to vector<1x128xf32>
    %240 = arith.mulf %239, %169 : vector<1x128xf32>
    %241 = vector.extract_strided_slice %238 {offsets = [1, 0], sizes = [1, 128], strides = [1, 1]} : vector<3x128xf32> to vector<1x128xf32>
    %242 = arith.mulf %241, %170 : vector<1x128xf32>
    %243 = arith.addf %240, %242 : vector<1x128xf32>
    %244 = vector.extract_strided_slice %238 {offsets = [2, 0], sizes = [1, 128], strides = [1, 1]} : vector<3x128xf32> to vector<1x128xf32>
    %245 = arith.mulf %244, %171 : vector<1x128xf32>
    %246 = arith.addf %243, %245 : vector<1x128xf32>
    %cst_31 = arith.constant 5.000000e-01 : f32
    %247 = vector.broadcast %cst_31 : f32 to vector<1x128xf32>
    %248 = arith.mulf %247, %169 : vector<1x128xf32>
    %249 = arith.mulf %248, %169 : vector<1x128xf32>
    %250 = vector.broadcast %249 : vector<1x128xf32> to vector<4x128xf32>
    %251 = arith.mulf %250, %100 : vector<4x128xf32>
    %cst_32 = arith.constant 5.000000e-01 : f32
    %252 = vector.broadcast %cst_32 : f32 to vector<1x128xf32>
    %253 = arith.mulf %252, %169 : vector<1x128xf32>
    %254 = arith.mulf %253, %170 : vector<1x128xf32>
    %255 = vector.broadcast %254 : vector<1x128xf32> to vector<4x128xf32>
    %256 = arith.mulf %255, %108 : vector<4x128xf32>
    %257 = arith.addf %251, %256 : vector<4x128xf32>
    %cst_33 = arith.constant 5.000000e-01 : f32
    %258 = vector.broadcast %cst_33 : f32 to vector<1x128xf32>
    %259 = arith.mulf %258, %169 : vector<1x128xf32>
    %260 = arith.mulf %259, %171 : vector<1x128xf32>
    %261 = vector.broadcast %260 : vector<1x128xf32> to vector<4x128xf32>
    %262 = arith.mulf %261, %114 : vector<4x128xf32>
    %263 = arith.addf %257, %262 : vector<4x128xf32>
    %cst_34 = arith.constant 5.000000e-01 : f32
    %264 = vector.broadcast %cst_34 : f32 to vector<1x128xf32>
    %265 = arith.mulf %264, %170 : vector<1x128xf32>
    %266 = arith.mulf %265, %169 : vector<1x128xf32>
    %267 = vector.broadcast %266 : vector<1x128xf32> to vector<4x128xf32>
    %268 = arith.mulf %267, %108 : vector<4x128xf32>
    %269 = arith.addf %263, %268 : vector<4x128xf32>
    %cst_35 = arith.constant 5.000000e-01 : f32
    %270 = vector.broadcast %cst_35 : f32 to vector<1x128xf32>
    %271 = arith.mulf %270, %170 : vector<1x128xf32>
    %272 = arith.mulf %271, %170 : vector<1x128xf32>
    %273 = vector.broadcast %272 : vector<1x128xf32> to vector<4x128xf32>
    %274 = arith.mulf %273, %128 : vector<4x128xf32>
    %275 = arith.addf %269, %274 : vector<4x128xf32>
    %cst_36 = arith.constant 5.000000e-01 : f32
    %276 = vector.broadcast %cst_36 : f32 to vector<1x128xf32>
    %277 = arith.mulf %276, %170 : vector<1x128xf32>
    %278 = arith.mulf %277, %171 : vector<1x128xf32>
    %279 = vector.broadcast %278 : vector<1x128xf32> to vector<4x128xf32>
    %280 = arith.mulf %279, %144 : vector<4x128xf32>
    %281 = arith.addf %275, %280 : vector<4x128xf32>
    %cst_37 = arith.constant 5.000000e-01 : f32
    %282 = vector.broadcast %cst_37 : f32 to vector<1x128xf32>
    %283 = arith.mulf %282, %171 : vector<1x128xf32>
    %284 = arith.mulf %283, %169 : vector<1x128xf32>
    %285 = vector.broadcast %284 : vector<1x128xf32> to vector<4x128xf32>
    %286 = arith.mulf %285, %114 : vector<4x128xf32>
    %287 = arith.addf %281, %286 : vector<4x128xf32>
    %cst_38 = arith.constant 5.000000e-01 : f32
    %288 = vector.broadcast %cst_38 : f32 to vector<1x128xf32>
    %289 = arith.mulf %288, %171 : vector<1x128xf32>
    %290 = arith.mulf %289, %170 : vector<1x128xf32>
    %291 = vector.broadcast %290 : vector<1x128xf32> to vector<4x128xf32>
    %292 = arith.mulf %291, %144 : vector<4x128xf32>
    %293 = arith.addf %287, %292 : vector<4x128xf32>
    %cst_39 = arith.constant 5.000000e-01 : f32
    %294 = vector.broadcast %cst_39 : f32 to vector<1x128xf32>
    %295 = arith.mulf %294, %171 : vector<1x128xf32>
    %296 = arith.mulf %295, %171 : vector<1x128xf32>
    %297 = vector.broadcast %296 : vector<1x128xf32> to vector<4x128xf32>
    %298 = arith.mulf %297, %166 : vector<4x128xf32>
    %299 = arith.addf %293, %298 : vector<4x128xf32>
    %300 = arith.subf %299, %28 : vector<4x128xf32>
    %301 = vector.extract_strided_slice %300 {offsets = [0, 0], sizes = [2, 128], strides = [1, 1]} : vector<4x128xf32> to vector<2x128xf32>
    %302 = vector.extract_strided_slice %300 {offsets = [2, 0], sizes = [1, 128], strides = [1, 1]} : vector<4x128xf32> to vector<1x128xf32>
    %303 = vector.extract_strided_slice %300 {offsets = [3, 0], sizes = [1, 128], strides = [1, 1]} : vector<4x128xf32> to vector<1x128xf32>
    %cst_40 = arith.constant 0.000000e+00 : f32
    %304 = vector.broadcast %cst_40 : f32 to vector<1x128xf32>
    %305 = arith.subf %304, %4 : vector<1x128xf32>
    %306 = arith.mulf %305, %302 : vector<1x128xf32>
    %307 = arith.mulf %3, %303 : vector<1x128xf32>
    %308 = arith.addf %306, %307 : vector<1x128xf32>
    %309 = tpu.concatenate %301, %308 in 0 : vector<2x128xf32>, vector<1x128xf32> -> vector<3x128xf32>
    %310 = vector.extract_strided_slice %309 {offsets = [0, 0], sizes = [1, 128], strides = [1, 1]} : vector<3x128xf32> to vector<1x128xf32>
    %311 = arith.subf %310, %196 : vector<1x128xf32>
    %312 = vector.extract_strided_slice %309 {offsets = [1, 0], sizes = [1, 128], strides = [1, 1]} : vector<3x128xf32> to vector<1x128xf32>
    %313 = arith.subf %312, %221 : vector<1x128xf32>
    %314 = vector.extract_strided_slice %309 {offsets = [2, 0], sizes = [1, 128], strides = [1, 1]} : vector<3x128xf32> to vector<1x128xf32>
    %315 = arith.subf %314, %246 : vector<1x128xf32>
    %316 = math.rsqrt %102 : vector<1x128xf32>
    %317 = arith.mulf %103, %316 : vector<1x128xf32>
    %318 = arith.mulf %317, %317 : vector<1x128xf32>
    %319 = arith.subf %130, %318 : vector<1x128xf32>
    %320 = math.rsqrt %319 : vector<1x128xf32>
    %321 = arith.mulf %109, %316 : vector<1x128xf32>
    %322 = arith.mulf %321, %317 : vector<1x128xf32>
    %323 = arith.subf %138, %322 : vector<1x128xf32>
    %324 = arith.mulf %323, %320 : vector<1x128xf32>
    %325 = arith.mulf %321, %321 : vector<1x128xf32>
    %326 = arith.subf %168, %325 : vector<1x128xf32>
    %327 = arith.mulf %324, %324 : vector<1x128xf32>
    %328 = arith.subf %326, %327 : vector<1x128xf32>
    %329 = math.rsqrt %328 : vector<1x128xf32>
    %330 = arith.mulf %311, %316 : vector<1x128xf32>
    %331 = arith.mulf %317, %330 : vector<1x128xf32>
    %332 = arith.subf %313, %331 : vector<1x128xf32>
    %333 = arith.mulf %332, %320 : vector<1x128xf32>
    %334 = arith.mulf %321, %330 : vector<1x128xf32>
    %335 = arith.subf %315, %334 : vector<1x128xf32>
    %336 = arith.mulf %324, %333 : vector<1x128xf32>
    %337 = arith.subf %335, %336 : vector<1x128xf32>
    %338 = arith.mulf %337, %329 : vector<1x128xf32>
    %339 = arith.mulf %338, %329 : vector<1x128xf32>
    %340 = arith.mulf %324, %339 : vector<1x128xf32>
    %341 = arith.subf %333, %340 : vector<1x128xf32>
    %342 = arith.mulf %341, %320 : vector<1x128xf32>
    %343 = arith.mulf %317, %342 : vector<1x128xf32>
    %344 = arith.subf %330, %343 : vector<1x128xf32>
    %345 = arith.mulf %321, %339 : vector<1x128xf32>
    %346 = arith.subf %344, %345 : vector<1x128xf32>
    %347 = arith.mulf %346, %316 : vector<1x128xf32>
    %348 = vector.extract_strided_slice %2 {offsets = [0, 0], sizes = [2, 128], strides = [1, 1]} : vector<3x128xf32> to vector<2x128xf32>
    %c0_41 = arith.constant 0 : index
    %c0_42 = arith.constant 0 : index
    %349 = vector.load %arg4[%c0_41, %c0_42] : memref<7x128xf32, #tpu.memory_space<vmem>>, vector<2x128xf32>
    tpu.vector_store %arg4[%c0_41, %c0_42], %348 {strides = array<i32>} : memref<7x128xf32, #tpu.memory_space<vmem>>, vector<2x128xf32>,
    %c2 = arith.constant 2 : index
    %c0_43 = arith.constant 0 : index
    %350 = vector.load %arg4[%c2, %c0_43] : memref<7x128xf32, #tpu.memory_space<vmem>>, vector<1x128xf32>
    tpu.vector_store %arg4[%c2, %c0_43], %8 {strides = array<i32>} : memref<7x128xf32, #tpu.memory_space<vmem>>, vector<1x128xf32>,
    %c3 = arith.constant 3 : index
    %c0_44 = arith.constant 0 : index
    %351 = vector.load %arg4[%c3, %c0_44] : memref<7x128xf32, #tpu.memory_space<vmem>>, vector<1x128xf32>
    tpu.vector_store %arg4[%c3, %c0_44], %9 {strides = array<i32>} : memref<7x128xf32, #tpu.memory_space<vmem>>, vector<1x128xf32>,
    %c4 = arith.constant 4 : index
    %c0_45 = arith.constant 0 : index
    %352 = vector.load %arg4[%c4, %c0_45] : memref<7x128xf32, #tpu.memory_space<vmem>>, vector<1x128xf32>
    tpu.vector_store %arg4[%c4, %c0_45], %347 {strides = array<i32>} : memref<7x128xf32, #tpu.memory_space<vmem>>, vector<1x128xf32>,
    %c5 = arith.constant 5 : index
    %c0_46 = arith.constant 0 : index
    %353 = vector.load %arg4[%c5, %c0_46] : memref<7x128xf32, #tpu.memory_space<vmem>>, vector<1x128xf32>
    tpu.vector_store %arg4[%c5, %c0_46], %342 {strides = array<i32>} : memref<7x128xf32, #tpu.memory_space<vmem>>, vector<1x128xf32>,
    %c6 = arith.constant 6 : index
    %c0_47 = arith.constant 0 : index
    %354 = vector.load %arg4[%c6, %c0_47] : memref<7x128xf32, #tpu.memory_space<vmem>>, vector<1x128xf32>
    tpu.vector_store %arg4[%c6, %c0_47], %339 {strides = array<i32>} : memref<7x128xf32, #tpu.memory_space<vmem>>, vector<1x128xf32>,
    return
  }
  func.func @transform_0(%arg0: i32) -> (i32, i32) {
    %c0_i32 = arith.constant 0 : i32
    %c0_i32_0 = arith.constant 0 : i32
    return %c0_i32, %arg0 : i32, i32
  }
  func.func @transform_1(%arg0: i32) -> (i32, i32) {
    %c0_i32 = arith.constant 0 : i32
    %c0_i32_0 = arith.constant 0 : i32
    %c0_i32_1 = arith.constant 0 : i32
    return %c0_i32, %c0_i32_0 : i32, i32
  }
  func.func @transform_2(%arg0: i32) -> (i32, i32) {
    %c0_i32 = arith.constant 0 : i32
    %c0_i32_0 = arith.constant 0 : i32
    %c0_i32_1 = arith.constant 0 : i32
    return %c0_i32, %c0_i32_0 : i32, i32
  }
  func.func @transform_3(%arg0: i32) -> (i32, i32) {
    %c0_i32 = arith.constant 0 : i32
    %c0_i32_0 = arith.constant 0 : i32
    return %c0_i32, %arg0 : i32, i32
  }
}

</mosaic_0001>

<llo_original>
// kernel: lnnode_forward.1
$region0: #{lnnode_forward.1}
  #allocation0 [shape = 'u32[]', space=smem, size = 0x4, offset = 0x4, fixed_abs, tag = 'smem constant byte address 0x4 - core index']
  #allocation1 [shape = 'u32[72,128]{1,0:T(1,128)}', space=vmem, size = 0x9000, scoped, tag = 'internal scratch']
  %s0 = inlined_call_operand.vmem [shape: f32[7,128], index: 0, kind: input, shape index: {}]
  %s1 = inlined_call_operand.vmem [shape: f32[32,5], index: 1, kind: input, shape index: {}]
  %s2 = inlined_call_operand.vmem [shape: f32[34,49], index: 2, kind: input, shape index: {}]
  %s3 = inlined_call_operand.vmem [shape: f32[7,128], index: 3, kind: output, shape index: {}]
  %s4 = sld [smem:[#allocation0]]
  $region22: #{lnnode_forward.1} parent=0
    _
  %s6 = ssub.s32 1, %s4
  %s7 = scalar_select 0, %s6, %s4
  // Predicated region
  $region2: #{lnnode_forward.1} parent=0 // pred_check
    _
  $region3: #{lnnode_forward.1} parent=0 // pred_check_branch
    %9 = sbr.rel (0) target = $region5
  $region4: #{lnnode_forward.1} parent=0 // pred_region
    _
  $region5: #{lnnode_forward.1} parent=0 // pred_fallthru
    _
  // Predicated region
  $region6: #{lnnode_forward.1} parent=0 // pred_check
    _
  $region7: #{lnnode_forward.1} parent=0 // pred_check_branch
    %11 = sbr.rel (0) target = $region9
  $region8: #{lnnode_forward.1} parent=0 // pred_region
    _
  $region9: #{lnnode_forward.1} parent=0 // pred_fallthru
    _
  // Predicated region
  $region10: #{lnnode_forward.1} parent=0 // pred_check
    _
  $region11: #{lnnode_forward.1} parent=0 // pred_check_branch
    %13 = sbr.rel (0) target = $region13
  $region12: #{lnnode_forward.1} parent=0 // pred_region
    _
  $region13: #{lnnode_forward.1} parent=0 // pred_fallthru
    _
  %v14 = vld [vmem:[%s0] sm:$0x7f]
  %v15 = vsub.f32 0.0, %v14
  %v17 = vrot.slane %v14, 3
  %v19 = vmul.f32 %v15, %v17
  %v20 = vrot.slane %v14, 4
  %v22 = vmul.f32 %v14, %v20
  %vm23 = vcmask 1043456
  %v24 = vsel %vm23, %v14, 1.0
  %v25 = vld [vmem:[%s1] sm:$0xff]
  %v26 = vld [vmem:[%s1 + $0x8] sm:$0xff]
  %v27 = vld [vmem:[%s1 + $0x10] sm:$0xff]
  %v28 = vld [vmem:[%s1 + $0x18] sm:$0xff]
  %vm29 = vcmask 39936
  %v31 = vsel %vm29, %v25, 0
  %v34 = vsel %vm29, %v26, 0
  %v37 = vsel %vm29, %v27, 0
  %v40 = vsel %vm29, %v28, 0
  %vm42 = vcmask 1044480
  %v44 = vsel %vm42, %v24, 0
  %46 = vmatpush.msra.mxu0 0.0
  %47 = vmatpush.msra.mxu0 0.0
  %48 = vmatpush.msra.mxu0 0.0
  %49 = vmatpush.msra.mxu0 0.0
  %50 = vmatpush.msra.mxu0 0.0
  %51 = vmatpush.msra.mxu0 0.0
  %52 = vmatpush.msra.mxu0 0.0
  %53 = vmatpush.msra.mxu0 0.0
  %54 = vmatpush.msra.mxu0 0.0
  %55 = vmatpush.msra.mxu0 0.0
  %56 = vmatpush.msra.mxu0 0.0
  %57 = vmatpush.msra.mxu0 0.0
  %58 = vmatpush.msra.mxu0 0.0
  %59 = vmatpush.msra.mxu0 0.0
  %60 = vmatpush.msra.mxu0 0.0
  %61 = vmatpush.msra.mxu0 %v44
  %62 = vmatmul.f32.gmra.mxu0 %v31
  %v63 = vpop.f32.mrf.mxu0
  %v64 = vadd.f32 0.0, %v63
  %65 = vmatmul.f32.gmra.mxu0 %v34
  %v66 = vpop.f32.mrf.mxu0
  %v67 = vadd.f32 0.0, %v66
  %68 = vmatmul.f32.gmra.mxu0 %v37
  %v69 = vpop.f32.mrf.mxu0
  %v70 = vadd.f32 0.0, %v69
  %71 = vmatmul.f32.gmra.mxu0 %v40
  %v72 = vpop.f32.mrf.mxu0
  %v73 = vadd.f32 0.0, %v72
  %74 = vdwg.mxu0
  %v75 = vtanh.pop %v64
  %v76 = vtanh.pop %v67
  %v77 = vtanh.pop %v70
  %v78 = vtanh.pop %v73
  %v79 = vmul.f32 %v75, %v75
  %v80 = vmul.f32 %v76, %v76
  %v81 = vsub.f32 1.0, %v79
  %v82 = vsub.f32 1.0, %v80
  %v83 = vmul.f32 %v77, %v77
  %v84 = vmul.f32 %v78, %v78
  %v85 = vsub.f32 1.0, %v83
  %v86 = vsub.f32 1.0, %v84
  %v87 = vld [vmem:[%s2] sm:$0xff]
  %v88 = vld [vmem:[%s2 + $0x8] sm:$0xff]
  %v89 = vld [vmem:[%s2 + $0x10] sm:$0xff]
  %v90 = vld [vmem:[%s2 + $0x18] sm:$0xff]
  %v91 = vld [vmem:[%s2 + $0x20] sm:$0x3]
  %vm92 = vcmask 400384
  %v94 = vsel %vm92, %v87, 0
  %v97 = vsel %vm92, %v88, 0
  %v100 = vsel %vm92, %v89, 0
  %v103 = vsel %vm92, %v90, 0
  %v106 = vsel %vm92, %v91, 0
  %vm108 = vcmask 1040384
  %v110 = vsel %vm108, 1.0, 0
  %112 = vmatpush.msra.mxu0 0.0
  %113 = vmatpush.msra.mxu0 0.0
  %114 = vmatpush.msra.mxu0 0.0
  %115 = vmatpush.msra.mxu0 0.0
  %116 = vmatpush.msra.mxu0 0.0
  %117 = vmatpush.msra.mxu0 0.0
  %118 = vmatpush.msra.mxu0 0.0
  %119 = vmatpush.msra.mxu0 0.0
  %120 = vmatpush.msra.mxu0 0.0
  %121 = vmatpush.msra.mxu0 %v110
  %122 = vmatpush.msra.mxu0 %v86
  %123 = vmatpush.msra.mxu0 %v85
  %124 = vmatpush.msra.mxu0 %v82
  %125 = vmatpush.msra.mxu0 %v81
  %126 = vmatpush.msra.mxu0 %v76
  %127 = vmatpush.msra.mxu0 %v75
  %128 = vmatmul.f32.gmra.mxu0 %v94
  %v129 = vpop.f32.mrf.mxu0
  %v130 = vadd.f32 0.0, %v129
  %131 = vmatmul.f32.gmra.mxu0 %v97
  %v132 = vpop.f32.mrf.mxu0
  %v133 = vadd.f32 0.0, %v132
  %134 = vmatmul.f32.gmra.mxu0 %v100
  %v135 = vpop.f32.mrf.mxu0
  %v136 = vadd.f32 0.0, %v135
  %137 = vmatmul.f32.gmra.mxu0 %v103
  %v138 = vpop.f32.mrf.mxu0
  %v139 = vadd.f32 0.0, %v138
  %140 = vmatmul.f32.gmra.mxu0 %v106
  %v141 = vpop.f32.mrf.mxu0
  %v142 = vadd.f32 0.0, %v141
  %143 = vdwg.mxu0
  %v144 = vand.u32 2147483647, %v130
  %v145 = vsub.f32 0.0, %v144
  %v146 = vmul.f32 %v145, 1.442695
  %v147 = vpow.pop %v146
  %v148 = vadd.f32 %v147, 1.0
  %v149 = vlog2.pop %v148
  %v150 = vmul.f32 %v149, 0.6931472
  %v151 = vmul.f32 -0.5, %v147
  %v152 = vadd.f32 %v151, 1.0
  %v153 = vmul.f32 %v152, %v147
  %v154 = vand.u32 2147483647, %v147
  %vm155 = vcmp.lt.f32.partialorder %v154, 0.0004427343
  %v156 = vsel %vm155, %v153, %v150
  %v157 = vmax.f32 %v130, 0.0
  %v158 = vadd.f32 %v157, %v156
  %v159 = vadd.f32 %v147, 1.0
  %v160 = vrcp.pop %v159
  %v161 = vmul.f32 %v159, %v160
  %v162 = vsub.f32 1.0, %v161
  %v163 = vmul.f32 %v160, %v162
  %v164 = vadd.f32 %v160, %v163
  %vm165 = vweird.f32 %v159
  %vm166 = vweird.f32 %v160
  %vm167 = vmor %vm165, %vm166
  %v168 = vsel %vm167, %v160, %v164
  %v169 = vand.u32 2147483647, %v159
  %vm170 = vcmp.eq.f32.partialorder %v169, 8.507059e+37
  %v171 = vand.u32 %v159, 2147483648
  %v172 = vor.u32 1.1754944e-38, %v171
  %v173 = vsel %vm170, %v172, %v168
  %v174 = vmul.f32 1.0, %v173
  %vm175 = vcmp.ge.f32.partialorder %v130, 0.0
  %v176 = vmul.f32 %v147, %v174
  %v177 = vsel %vm175, %v174, %v176
  %v178 = vperm.slane %v177, 3
  %v179 = vmul.f32 %v178, %v136
  %v180 = vperm.slane %v177, 4
  %v181 = vmul.f32 %v180, %v136
  %v182 = vmul.f32 %v180, %v139
  %v183 = vperm.slane %v177, 5
  %v184 = vmul.f32 %v183, %v139
  %v185 = vmul.f32 %v158, %v158
  %v186 = vperm.slane %v158, 3
  %v187 = vmul.f32 %v179, %v186
  %v188 = vadd.f32 %v187, %v187
  %v189 = vadd.f32 %v185, 0.0001
  %v191 = vrot.slane %v130, 5
  %v193 = vmul.f32 %v158, %v191
  %v194 = vperm.slane %v130, 0
  %v195 = vmul.f32 %v179, %v194
  %v196 = vmul.f32 %v186, %v130
  %v197 = vmul.f32 %v186, %v133
  %v200 = vrot.slane %v196, 4
  %v201 = vrot.slane %v197, 4
  %v202 = vsel %vm23, %v200, %v201
  %v204 = vadd.f32 %v195, %v202
  %v205 = vrot.slane %v130, 6
  %v207 = vmul.f32 %v158, %v205
  %v208 = vperm.slane %v130, 1
  %v209 = vmul.f32 %v179, %v208
  %v210 = vadd.f32 %v209, %v197
  %v211 = vmul.f32 %v130, %v130
  %v212 = vmul.f32 %v130, %v194
  %v213 = vmul.f32 %v133, %v194
  %v214 = vadd.f32 %v212, %v212
  %v215 = vadd.f32 %v213, %v213
  %v217 = vrot.slane %v185, 4
  %v219 = vadd.f32 %v211, %v217
  %v220 = vperm.slane %v158, 4
  %v221 = vmul.f32 %v181, %v220
  %v222 = vmul.f32 %v182, %v220
  %v223 = vadd.f32 %v214, %v221
  %v224 = vadd.f32 %v215, %v222
  %v225 = vadd.f32 %v223, %v221
  %v226 = vadd.f32 %v224, %v222
  %v227 = vadd.f32 %v219, 0.0001
  %v228 = vrot.slane %v130, 1
  %v230 = vmul.f32 %v130, %v228
  %v231 = vmul.f32 %v130, %v208
  %v232 = vmul.f32 %v133, %v208
  %v234 = vrot.slane %v213, 4
  %v236 = vadd.f32 %v231, %v234
  %v237 = vadd.f32 %v232, %v234
  %v239 = vrot.slane %v207, 4
  %v241 = vadd.f32 %v230, %v239
  %v242 = vperm.slane %v130, 2
  %v243 = vmul.f32 %v181, %v242
  %v244 = vmul.f32 %v182, %v242
  %v245 = vadd.f32 %v236, %v243
  %v246 = vadd.f32 %v237, %v244
  %v247 = vmul.f32 %v220, %v133
  %v248 = vmul.f32 %v220, %v136
  %v249 = vadd.f32 %v245, %v247
  %v250 = vadd.f32 %v246, %v248
  %v251 = vadd.f32 %v232, %v232
  %v253 = vrot.slane %v211, 1
  %v255 = vadd.f32 %v211, %v253
  %v256 = vmul.f32 %v133, %v242
  %v257 = vmul.f32 %v136, %v242
  %v260 = vrot.slane %v256, 4
  %v261 = vrot.slane %v257, 4
  %v262 = vsel %vm23, %v260, %v261
  %v264 = vadd.f32 %v251, %v262
  %v265 = vadd.f32 %v264, %v262
  %v266 = vadd.f32 %v255, %v217
  %v267 = vperm.slane %v158, 5
  %v268 = vmul.f32 %v184, %v267
  %v269 = vadd.f32 %v265, %v268
  %v270 = vadd.f32 %v269, %v268
  %v271 = vadd.f32 %v266, 0.0001
  %v272 = vperm.slane %v14, 4
  %v273 = vmul.f32 %v188, %v272
  %v274 = vperm.slane %v14, 5
  %v275 = vmul.f32 %v204, %v274
  %v276 = vadd.f32 %v273, %v275
  %v277 = vperm.slane %v14, 6
  %v278 = vmul.f32 %v210, %v277
  %v279 = vadd.f32 %v276, %v278
  %v281 = vrot.slane %v279, 1
  %v283 = vmul.f32 %v15, %v281
  %v284 = vrot.slane %v279, 3
  %v286 = vmul.f32 %v14, %v284
  %v288 = vrot.slane %v286, 7
  %v290 = vadd.f32 %v283, %v288
  %v291 = vrot.slane %v279, 2
  %v294 = vrot.slane %v290, 1
  %vm296 = vcmask 1041408
  %v297 = vsel %vm296, %v291, %v294
  %v298 = vmul.f32 %v297, %v20
  %v300 = vrot.slane %v298, 1
  %v302 = vadd.f32 %v298, %v300
  %v303 = vrot.slane %v298, 2
  %v305 = vadd.f32 %v302, %v303
  %v306 = vmul.f32 %v204, %v272
  %v307 = vmul.f32 %v225, %v274
  %v308 = vmul.f32 %v226, %v274
  %v311 = vrot.slane %v307, 4
  %v312 = vrot.slane %v308, 4
  %v313 = vsel %vm23, %v311, %v312
  %v315 = vadd.f32 %v306, %v313
  %v316 = vmul.f32 %v249, %v277
  %v317 = vmul.f32 %v250, %v277
  %v320 = vrot.slane %v316, 4
  %v321 = vrot.slane %v317, 4
  %v322 = vsel %vm23, %v320, %v321
  %v324 = vadd.f32 %v315, %v322
  %v326 = vrot.slane %v324, 1
  %v328 = vmul.f32 %v15, %v326
  %v329 = vrot.slane %v324, 3
  %v331 = vmul.f32 %v14, %v329
  %v333 = vrot.slane %v331, 7
  %v335 = vadd.f32 %v328, %v333
  %v336 = vrot.slane %v324, 2
  %v339 = vrot.slane %v335, 1
  %v341 = vsel %vm296, %v336, %v339
  %v342 = vmul.f32 %v341, %v20
  %v344 = vrot.slane %v342, 1
  %v346 = vadd.f32 %v342, %v344
  %v347 = vrot.slane %v342, 2
  %v349 = vadd.f32 %v346, %v347
  %v350 = vmul.f32 %v210, %v272
  %v351 = vmul.f32 %v249, %v274
  %v352 = vmul.f32 %v250, %v274
  %v355 = vrot.slane %v351, 4
  %v356 = vrot.slane %v352, 4
  %v357 = vsel %vm23, %v355, %v356
  %v359 = vadd.f32 %v350, %v357
  %v360 = vmul.f32 %v270, %v277
  %v361 = vadd.f32 %v359, %v360
  %v363 = vrot.slane %v361, 1
  %v365 = vmul.f32 %v15, %v363
  %v366 = vrot.slane %v361, 3
  %v368 = vmul.f32 %v14, %v366
  %v370 = vrot.slane %v368, 7
  %v372 = vadd.f32 %v365, %v370
  %v373 = vrot.slane %v361, 2
  %v376 = vrot.slane %v372, 1
  %v378 = vsel %vm296, %v373, %v376
  %v379 = vmul.f32 %v378, %v20
  %v381 = vrot.slane %v379, 1
  %v383 = vadd.f32 %v379, %v381
  %v384 = vrot.slane %v379, 2
  %v386 = vadd.f32 %v383, %v384
  %v387 = vmul.f32 %v14, 0.5
  %v388 = vmul.f32 %v387, %v14
  %v389 = vperm.slane %v388, 4
  %v390 = vmul.f32 %v389, %v188
  %v391 = vrot.slane %v14, 1
  %v393 = vmul.f32 %v387, %v391
  %v394 = vperm.slane %v393, 4
  %v395 = vmul.f32 %v394, %v204
  %v396 = vadd.f32 %v390, %v395
  %v397 = vrot.slane %v14, 2
  %v399 = vmul.f32 %v387, %v397
  %v400 = vperm.slane %v399, 4
  %v401 = vmul.f32 %v400, %v210
  %v402 = vadd.f32 %v396, %v401
  %v403 = vrot.slane %v14, 7
  %v405 = vmul.f32 %v387, %v403
  %v406 = vperm.slane %v405, 5
  %v407 = vmul.f32 %v406, %v204
  %v408 = vadd.f32 %v402, %v407
  %v409 = vperm.slane %v388, 5
  %v410 = vmul.f32 %v409, %v225
  %v411 = vmul.f32 %v409, %v226
  %v414 = vrot.slane %v410, 4
  %v415 = vrot.slane %v411, 4
  %v416 = vsel %vm23, %v414, %v415
  %v418 = vadd.f32 %v408, %v416
  %v419 = vperm.slane %v393, 5
  %v420 = vmul.f32 %v419, %v249
  %v421 = vmul.f32 %v419, %v250
  %v424 = vrot.slane %v420, 4
  %v425 = vrot.slane %v421, 4
  %v426 = vsel %vm23, %v424, %v425
  %v428 = vadd.f32 %v418, %v426
  %v429 = vrot.slane %v14, 6
  %v431 = vmul.f32 %v387, %v429
  %v432 = vperm.slane %v431, 6
  %v433 = vmul.f32 %v432, %v210
  %v434 = vadd.f32 %v428, %v433
  %v435 = vperm.slane %v405, 6
  %v436 = vmul.f32 %v435, %v249
  %v437 = vmul.f32 %v435, %v250
  %v440 = vrot.slane %v436, 4
  %v441 = vrot.slane %v437, 4
  %v442 = vsel %vm23, %v440, %v441
  %v444 = vadd.f32 %v434, %v442
  %v445 = vperm.slane %v388, 6
  %v446 = vmul.f32 %v445, %v270
  %v447 = vadd.f32 %v444, %v446
  %v450 = vrot.slane %v139, 4
  %v451 = vrot.slane %v142, 4
  %v452 = vsel %vm23, %v450, %v451
  %v454 = vsub.f32 %v447, %v452
  %v456 = vrot.slane %v454, 1
  %v458 = vmul.f32 %v15, %v456
  %v459 = vrot.slane %v454, 3
  %v461 = vmul.f32 %v14, %v459
  %v463 = vrot.slane %v461, 7
  %v465 = vadd.f32 %v458, %v463
  %v466 = vrot.slane %v454, 2
  %v469 = vrot.slane %v465, 1
  %v471 = vsel %vm296, %v466, %v469
  %v472 = vsub.f32 %v471, %v305
  %v474 = vrot.slane %v349, 7
  %v476 = vsub.f32 %v471, %v474
  %v478 = vrot.slane %v386, 6
  %v480 = vsub.f32 %v471, %v478
  %v481 = vrsqrt.pop %v189
  %v482 = vmul.f32 %v481, %v189
  %v483 = vmul.f32 %v482, %v481
  %v484 = vmul.f32 0.5, %v483
  %v485 = vsub.f32 1.5, %v484
  %v486 = vmul.f32 %v481, %v485
  %vm487 = vweird.f32 %v189
  %vm488 = vweird.f32 %v481
  %vm489 = vmor %vm487, %vm488
  %v490 = vsel %vm489, %v481, %v486
  %v491 = vmul.f32 %v193, %v490
  %v492 = vmul.f32 %v491, %v491
  %v494 = vrot.slane %v492, 3
  %v496 = vsub.f32 %v227, %v494
  %v497 = vrsqrt.pop %v496
  %v498 = vmul.f32 %v497, %v496
  %v499 = vmul.f32 %v498, %v497
  %v500 = vmul.f32 0.5, %v499
  %v501 = vsub.f32 1.5, %v500
  %v502 = vmul.f32 %v497, %v501
  %vm503 = vweird.f32 %v496
  %vm504 = vweird.f32 %v497
  %vm505 = vmor %vm503, %vm504
  %v506 = vsel %vm505, %v497, %v502
  %v507 = vmul.f32 %v207, %v490
  %v508 = vmul.f32 %v507, %v491
  %v510 = vrot.slane %v508, 3
  %v512 = vsub.f32 %v241, %v510
  %v513 = vmul.f32 %v512, %v506
  %v514 = vmul.f32 %v507, %v507
  %v516 = vrot.slane %v514, 2
  %v518 = vsub.f32 %v271, %v516
  %v519 = vmul.f32 %v513, %v513
  %v521 = vrot.slane %v519, 7
  %v523 = vsub.f32 %v518, %v521
  %v524 = vrsqrt.pop %v523
  %v525 = vmul.f32 %v524, %v523
  %v526 = vmul.f32 %v525, %v524
  %v527 = vmul.f32 0.5, %v526
  %v528 = vsub.f32 1.5, %v527
  %v529 = vmul.f32 %v524, %v528
  %vm530 = vweird.f32 %v523
  %vm531 = vweird.f32 %v524
  %vm532 = vmor %vm530, %vm531
  %v533 = vsel %vm532, %v524, %v529
  %v535 = vrot.slane %v490, 3
  %v537 = vmul.f32 %v472, %v535
  %v539 = vrot.slane %v537, 5
  %v541 = vmul.f32 %v491, %v539
  %v543 = vrot.slane %v541, 2
  %v545 = vsub.f32 %v476, %v543
  %v547 = vrot.slane %v506, 7
  %v549 = vmul.f32 %v545, %v547
  %v550 = vmul.f32 %v507, %v539
  %v552 = vrot.slane %v550, 1
  %v554 = vsub.f32 %v480, %v552
  %v556 = vrot.slane %v549, 1
  %v558 = vmul.f32 %v513, %v556
  %v560 = vrot.slane %v558, 6
  %v562 = vsub.f32 %v554, %v560
  %v564 = vrot.slane %v533, 7
  %v566 = vmul.f32 %v562, %v564
  %v567 = vmul.f32 %v566, %v564
  %v569 = vrot.slane %v567, 2
  %v571 = vmul.f32 %v513, %v569
  %v573 = vrot.slane %v571, 7
  %v575 = vsub.f32 %v549, %v573
  %v576 = vmul.f32 %v575, %v547
  %v578 = vrot.slane %v576, 6
  %v580 = vmul.f32 %v491, %v578
  %v582 = vrot.slane %v580, 3
  %v584 = vsub.f32 %v537, %v582
  %v585 = vrot.slane %v567, 7
  %v587 = vmul.f32 %v507, %v585
  %v589 = vrot.slane %v587, 3
  %v591 = vsub.f32 %v584, %v589
  %v592 = vmul.f32 %v591, %v535
  %593 = vst [vmem:[%s3 - $0x4] sm:$0x30] %v14
  %594 = vst [vmem:[%s3 - $0x1] sm:$0x8] %v19
  %595 = vst [vmem:[%s3 + $0x1] sm:$0x4] %v22
  %596 = vst [vmem:[%s3 + $0x4] sm:$0x1] %v592
  %597 = vst [vmem:[%s3 + $0x4] sm:$0x2] %v576
  %598 = vst [vmem:[%s3 + $0x4] sm:$0x4] %v567
  // Predicated region
  $region14: #{lnnode_forward.1} parent=0 // pred_check
    _
  $region15: #{lnnode_forward.1} parent=0 // pred_check_branch
    %600 = sbr.rel (0) target = $region17
  $region16: #{lnnode_forward.1} parent=0 // pred_region
    _
  $region17: #{lnnode_forward.1} parent=0 // pred_fallthru
    _
  // Predicated region
  $region18: #{lnnode_forward.1} parent=0 // pred_check
    _
  $region19: #{lnnode_forward.1} parent=0 // pred_check_branch
    %602 = sbr.rel (0) target = $region21
  $region20: #{lnnode_forward.1} parent=0 // pred_region
    _
  $region21: #{lnnode_forward.1} parent=0 // pred_fallthru
    _

</llo_original>
